<compile_context>
chip_gen: v6e
topology: v6e:2x2x1
jax: 0.10.0
libtpu: 0.0.40
codegen_flags: <defaults>
</compile_context>

<pallas_src>
import functools

import jax
import jax.numpy as jnp
from jax.experimental import pallas as pl
from jax.experimental.pallas import tpu as pltpu

LANES = 128  # TPU lane width; point index folds into (rows, 128)


# ----------------------------------------------------------------------------
# Generation-aware tiling heuristics
# ----------------------------------------------------------------------------
@functools.lru_cache(maxsize=1)
def _tpu_tile_config():
    """Returns (target_rows, num_tensorcores) for the local TPU generation.

    target_rows is sized so that (3 pts + 1 deltas + 1 dens + 3 feat) f32
    planes of (target_rows, 128), double-buffered, stay under the default
    scoped-VMEM limit for that chip (no vmem_limit_bytes needed).
    """
    try:
        kind = jax.devices()[0].device_kind.lower()
    except Exception:  # pragma: no cover - be conservative if query fails
        return 1024, 1
    if "v7" in kind:
        return 2048, 2   # 2 TCs/chip; 16 MiB double-buffered < 32 MiB default
    if "v6" in kind:
        return 2048, 1   # 16 MiB < 32 MiB scoped default
    return 1024, 1       # v5e & older: 8 MiB < 16 MiB scoped default


def _round_up8(x):
    return ((x + 7) // 8) * 8


def _choose_row_tile(n_rows, target_rows, num_cores):
    """Rows per grid step.

    Single-TC chips: one big step whenever it fits (no forced split -> no
    doubled 0.35 us per-step pipeline overhead for mid-size N).
    2-TC chips (v7x): force an even number of grid steps so the "parallel"
    grid axis shards 50/50 across the two TensorCores.
    """
    if n_rows <= 8:
        return n_rows                         # full-extent block (always legal)
    if num_cores <= 1:
        return n_rows if n_rows <= target_rows else target_rows
    steps = max(2, pl.cdiv(n_rows, target_rows))
    if steps % 2:
        steps += 1                            # even split across 2 TCs
    return min(target_rows, _round_up8(pl.cdiv(n_rows, steps)))


# ----------------------------------------------------------------------------
# Kernels
# ----------------------------------------------------------------------------
def _density_tile(params_ref, pts_ref, deltas_ref):
    """Shared elementwise hot path on a (TM, 128) tile.

    params_ref (SMEM, f32[9]): [cx, cy, cz, radius, alpha, beta, fx, fy, fz]
    Returns (density_out, dx, dy, dz).
    """
    cx = params_ref[0]
    cy = params_ref[1]
    cz = params_ref[2]
    radius = params_ref[3]
    alpha = params_ref[4]
    inv_beta = 1.0 / params_ref[5]            # hoisted: one scalar divide / step

    dx = pts_ref[0] - cx                      # (TM, 128), sublane/lane-dense
    dy = pts_ref[1] - cy
    dz = pts_ref[2] - cz

    # SphereSDF: ||p - c|| - r
    sd = jnp.sqrt(dx * dx + dy * dy + dz * dz) - radius

    # _sdf_to_density with a single exp:
    #   sd >  0: 0.5 * exp(-sd/beta)     = 0.5 * e
    #   sd <= 0: 1 - 0.5 * exp(sd/beta)  = 1 - 0.5 * e    where e = exp(-|sd|/beta)
    e = jnp.exp(-jnp.abs(sd) * inv_beta)
    density = alpha * jnp.where(sd > 0.0, 0.5 * e, 1.0 - 0.5 * e)

    # Exact divide (approx reciprocal would break the 1e-5 tolerance; this
    # kernel is HBM-bound, not EUP-bound, so there is nothing to gain anyway).
    return -jnp.log(1.0 - density) / deltas_ref[...], dx, dy, dz


def _rainbow_kernel(params_ref, pts_ref, deltas_ref, dens_ref, feat_ref):
    dens, dx, dy, dz = _density_tile(params_ref, pts_ref, deltas_ref)
    dens_ref[...] = dens
    # base_color = clamp(|p - center|, 0.02, 0.98); feature param broadcasts over N
    feat_ref[0] = jnp.clip(jnp.abs(dx), 0.02, 0.98) * params_ref[6]
    feat_ref[1] = jnp.clip(jnp.abs(dy), 0.02, 0.98) * params_ref[7]
    feat_ref[2] = jnp.clip(jnp.abs(dz), 0.02, 0.98) * params_ref[8]


def _density_only_kernel(params_ref, pts_ref, deltas_ref, dens_ref):
    dens, _, _, _ = _density_tile(params_ref, pts_ref, deltas_ref)
    dens_ref[...] = dens


def _run_kernel(params, pts_b, deltas_b, rainbow):
    """pts_b: (3, n_rows, 128) f32; deltas_b: (n_rows, 128) f32."""
    n_rows = pts_b.shape[1]
    target_rows, num_cores = _tpu_tile_config()
    tm = _choose_row_tile(n_rows, target_rows, num_cores)
    grid = (pl.cdiv(n_rows, tm),)

    in_specs = [
        pl.BlockSpec(memory_space=pltpu.MemorySpace.SMEM),   # params (9 scalars)
        pl.BlockSpec((3, tm, LANES), lambda i: (0, i, 0)),   # points, coords-major
        pl.BlockSpec((tm, LANES), lambda i: (i, 0)),         # deltas
    ]

    if rainbow:
        out_shape = (
            jax.ShapeDtypeStruct((n_rows, LANES), jnp.float32),
            jax.ShapeDtypeStruct((3, n_rows, LANES), jnp.float32),
        )
        out_specs = (
            pl.BlockSpec((tm, LANES), lambda i: (i, 0)),
            pl.BlockSpec((3, tm, LANES), lambda i: (0, i, 0)),
        )
        kernel = _rainbow_kernel
    else:
        # Feature is a per-call constant in this mode: do NOT waste 12 B/point
        # of HBM writes on it; the wrapper broadcasts the 3 params instead.
        out_shape = jax.ShapeDtypeStruct((n_rows, LANES), jnp.float32)
        out_specs = pl.BlockSpec((tm, LANES), lambda i: (i, 0))
        kernel = _density_only_kernel

    out = pl.pallas_call(
        kernel,
        out_shape=out_shape,
        grid=grid,
        in_specs=in_specs,
        out_specs=out_specs,
        compiler_params=pltpu.CompilerParams(dimension_semantics=("parallel",)),
    )(params, pts_b, deltas_b)

    if rainbow:
        return out[0], out[1]
    return out, None


# ----------------------------------------------------------------------------
# Forward wrapper
# ----------------------------------------------------------------------------
@functools.partial(jax.jit, static_argnames=("rainbow", "coords_major_io"))
def sdf_volume_forward(sample_points, sample_lengths, params, *,
                       rainbow=True, coords_major_io=False):
    """SDFVolume.forward (SphereSDF).

    sample_lengths: (R, S, L) f32 (L >= 1), depths monotone along S.
    params: f32[9] = [cx, cy, cz, radius, alpha, beta, fx, fy, fz].

    coords_major_io=False (default, PyTorch parity):
        sample_points: (R, S, 3)  ->  {"density": (N, 1), "feature": (N, 3)}
        (pays one (N,3)->(3,N) input transpose and one (3,N)->(N,3) output
         transpose -- that is the layout-plumbing cost of the PyTorch layout).
    coords_major_io=True (fast path):
        sample_points: (3, R, S) or (3, N)  ->  feature returned as (3, N),
        zero extra HBM transposes around the kernel.
    """
    depth = sample_lengths[..., 0].astype(jnp.float32)  # (R, S)
    # deltas = cat(diff(depth), 1e10) flattened.
    # TODO(synk): fuse the depth diff in-kernel (pltpu.roll on the idle XLU
    # slot + per-ray terminator mask) to save this extra ~8 B/point HBM pass.
    deltas = jnp.concatenate(
        [depth[..., 1:] - depth[..., :-1], jnp.full_like(depth[..., :1], 1e10)],
        axis=-1,
    ).reshape(-1)  # (N,)

    if coords_major_io:
        pts_t = sample_points.reshape(3, -1).astype(jnp.float32)   # zero-copy
    else:
        pts_t = sample_points.reshape(-1, 3).astype(jnp.float32).T  # HBM transpose
    N = pts_t.shape[1]

    # Fold N into a sublane-full (n_rows, 128) slab; pad only up to the next
    # multiple of 128 (row-tile raggedness is handled by Pallas partial blocks).
    n_rows = pl.cdiv(N, LANES)
    n_pad = n_rows * LANES
    pad = n_pad - N
    if pad:
        pts_t = jnp.pad(pts_t, ((0, 0), (0, pad)))
        deltas = jnp.pad(deltas, (0, pad), constant_values=1.0)  # avoid /0 in dead lanes
    pts_b = pts_t.reshape(3, n_rows, LANES)
    deltas_b = deltas.reshape(n_rows, LANES)

    dens_b, feat_b = _run_kernel(params, pts_b, deltas_b, rainbow)

    # Density slab is already in flat-N order: pure reshape (slice only if padded).
    density = dens_b.reshape(n_pad)[:N].reshape(N, 1)

    if rainbow:
        feat_flat = feat_b.reshape(3, n_pad)[:, :N]          # (3, N), zero-copy if pad == 0
        feature = feat_flat if coords_major_io else feat_flat.T
    else:
        f = params[6:9]
        feature = (jnp.broadcast_to(f[:, None], (3, N)) if coords_major_io
                   else jnp.broadcast_to(f, (N, 3)))
    return {"density": density, "feature": feature}


# ----------------------------------------------------------------------------
# Pure-JAX reference (port of SDFVolume.forward with SphereSDF) & test driver
# ----------------------------------------------------------------------------
def _reference(sample_points, sample_lengths, center, radius, alpha, beta, feature, rainbow):
    pts = sample_points.reshape(-1, 3)
    depth = sample_lengths[..., 0]
    deltas = jnp.concatenate(
        [depth[..., 1:] - depth[..., :-1], 1e10 * jnp.ones_like(depth[..., :1])],
        axis=-1,
    ).reshape(-1, 1)
    sd = jnp.linalg.norm(pts - center[None], axis=-1, keepdims=True) - radius
    density = jnp.where(sd > 0, 0.5 * jnp.exp(-sd / beta), 1.0 - 0.5 * jnp.exp(sd / beta)) * alpha
    if rainbow:
        base_color = jnp.clip(jnp.abs(pts - center[None]), 0.02, 0.98)
    else:
        base_color = 1.0
    return {
        "density": -jnp.log(1.0 - density) / deltas,
        "feature": base_color * feature * jnp.ones((pts.shape[0], 1), jnp.float32),
    }


if __name__ == "__main__":
    key = jax.random.PRNGKey(0)
    k_pts, k_len, k_pts2, k_len2 = jax.random.split(key, 4)

    # Deterministic SDFVolume parameters (cfg-equivalent values).
    center = jnp.array([0.0, 0.0, 0.25], jnp.float32)   # SphereSDF.center
    radius = jnp.float32(1.0)                            # SphereSDF.radius
    alpha = jnp.float32(0.8)                             # SDFVolume.alpha
    beta = jnp.float32(0.05)                             # SDFVolume.beta
    feature = jnp.ones((1, 3), jnp.float32)              # SDFVolume.feature (ones_like)
    params = jnp.concatenate(
        [center, jnp.array([radius, alpha, beta], jnp.float32), feature.reshape(-1)]
    )  # f32[9]

    # --- case 1: N multiple of 128 (no padding), PyTorch-parity layout -------
    n_rays, n_samples = 16, 16  # N = 256 points
    sample_points = jax.random.uniform(
        k_pts, (n_rays, n_samples, 3), minval=-1.5, maxval=1.5, dtype=jnp.float32)
    sample_lengths = jnp.cumsum(
        jax.random.uniform(k_len, (n_rays, n_samples, 1), minval=0.05, maxval=0.3,
                           dtype=jnp.float32), axis=1)

    out = sdf_volume_forward(sample_points, sample_lengths, params, rainbow=True)
    jax.block_until_ready(out)
    ref = _reference(sample_points, sample_lengths, center, radius, alpha, beta, feature, True)
    assert out["density"].shape == (n_rays * n_samples, 1)
    assert out["feature"].shape == (n_rays * n_samples, 3)
    assert jnp.allclose(out["density"], ref["density"], rtol=1e-5, atol=1e-5)
    assert jnp.allclose(out["feature"], ref["feature"], rtol=1e-5, atol=1e-5)

    # coords-major fast path (zero wrapper transposes): same values, (3, N) feature.
    pts_cm = jnp.transpose(sample_points, (2, 0, 1))  # sampler-side layout change
    out_cm = sdf_volume_forward(pts_cm, sample_lengths, params,
                                rainbow=True, coords_major_io=True)
    jax.block_until_ready(out_cm)
    assert jnp.allclose(out_cm["density"], ref["density"], rtol=1e-5, atol=1e-5)
    assert jnp.allclose(out_cm["feature"], ref["feature"].T, rtol=1e-5, atol=1e-5)

    # rainbow=False: feature is a broadcast constant built in the wrapper.
    out_nr = sdf_volume_forward(sample_points, sample_lengths, params, rainbow=False)
    jax.block_until_ready(out_nr)
    ref_nr = _reference(sample_points, sample_lengths, center, radius, alpha, beta, feature, False)
    assert jnp.allclose(out_nr["density"], ref_nr["density"], rtol=1e-5, atol=1e-5)
    assert jnp.allclose(out_nr["feature"], ref_nr["feature"], rtol=1e-5, atol=1e-5)

    # --- case 2: ragged N (exercises the lane-padding path) ------------------
    n_rays2, n_samples2 = 6, 7  # N = 42 points, pad = 86
    sample_points2 = jax.random.uniform(
        k_pts2, (n_rays2, n_samples2, 3), minval=-1.5, maxval=1.5, dtype=jnp.float32)
    sample_lengths2 = jnp.cumsum(
        jax.random.uniform(k_len2, (n_rays2, n_samples2, 1), minval=0.05, maxval=0.3,
                           dtype=jnp.float32), axis=1)
    out2 = sdf_volume_forward(sample_points2, sample_lengths2, params, rainbow=True)
    jax.block_until_ready(out2)
    ref2 = _reference(sample_points2, sample_lengths2, center, radius, alpha, beta, feature, True)
    assert jnp.allclose(out2["density"], ref2["density"], rtol=1e-5, atol=1e-5)
    assert jnp.allclose(out2["feature"], ref2["feature"], rtol=1e-5, atol=1e-5)

    # TODO(synk): BoxSDF variant (sdf.type == 'box') not wired in; kernel implements SphereSDF.
    print("KERNEL_OK")
</pallas_src>

<mosaic_0001>
module attributes {stable_mosaic.version = 11 : i64} {
  func.func @_rainbow_kernel(%arg0: i32, %arg1: memref<9xf32, #tpu.memory_space<smem>>, %arg2: memref<3x2x128xf32, #tpu.memory_space<vmem>>, %arg3: memref<2x128xf32, #tpu.memory_space<vmem>>, %arg4: memref<2x128xf32, #tpu.memory_space<vmem>>, %arg5: memref<3x2x128xf32, #tpu.memory_space<vmem>>) attributes {dimension_semantics = [#tpu.dimension_semantics<parallel>], iteration_bounds = array<i64: 1>, scalar_prefetch = 0 : i64, scratch_operands = 0 : i64, tpu.core_type = #tpu.core_type<tc>, window_params = [{transform_indices = @transform_0, window_bounds = array<i64: 9>}, {transform_indices = @transform_1, window_bounds = array<i64: 3, 2, 128>}, {transform_indices = @transform_2, window_bounds = array<i64: 2, 128>}, {transform_indices = @transform_3, window_bounds = array<i64: 2, 128>}, {transform_indices = @transform_4, window_bounds = array<i64: 3, 2, 128>}]} {
    %c0 = arith.constant 0 : index
    %0 = memref.load %arg1[%c0] : memref<9xf32, #tpu.memory_space<smem>>
    %c1 = arith.constant 1 : index
    %1 = memref.load %arg1[%c1] : memref<9xf32, #tpu.memory_space<smem>>
    %c2 = arith.constant 2 : index
    %2 = memref.load %arg1[%c2] : memref<9xf32, #tpu.memory_space<smem>>
    %c3 = arith.constant 3 : index
    %3 = memref.load %arg1[%c3] : memref<9xf32, #tpu.memory_space<smem>>
    %c4 = arith.constant 4 : index
    %4 = memref.load %arg1[%c4] : memref<9xf32, #tpu.memory_space<smem>>
    %c5 = arith.constant 5 : index
    %5 = memref.load %arg1[%c5] : memref<9xf32, #tpu.memory_space<smem>>
    %cst = arith.constant 1.000000e+00 : f32
    %6 = arith.divf %cst, %5 : f32
    %c0_0 = arith.constant 0 : index
    %c0_1 = arith.constant 0 : index
    %c0_2 = arith.constant 0 : index
    %7 = vector.load %arg2[%c0_0, %c0_1, %c0_2] : memref<3x2x128xf32, #tpu.memory_space<vmem>>, vector<1x2x128xf32>
    %8 = vector.shape_cast %7 : vector<1x2x128xf32> to vector<2x128xf32>
    %9 = vector.broadcast %0 : f32 to vector<2x128xf32>
    %10 = arith.subf %8, %9 : vector<2x128xf32>
    %c1_3 = arith.constant 1 : index
    %c0_4 = arith.constant 0 : index
    %c0_5 = arith.constant 0 : index
    %11 = vector.load %arg2[%c1_3, %c0_4, %c0_5] : memref<3x2x128xf32, #tpu.memory_space<vmem>>, vector<1x2x128xf32>
    %12 = vector.shape_cast %11 : vector<1x2x128xf32> to vector<2x128xf32>
    %13 = vector.broadcast %1 : f32 to vector<2x128xf32>
    %14 = arith.subf %12, %13 : vector<2x128xf32>
    %c2_6 = arith.constant 2 : index
    %c0_7 = arith.constant 0 : index
    %c0_8 = arith.constant 0 : index
    %15 = vector.load %arg2[%c2_6, %c0_7, %c0_8] : memref<3x2x128xf32, #tpu.memory_space<vmem>>, vector<1x2x128xf32>
    %16 = vector.shape_cast %15 : vector<1x2x128xf32> to vector<2x128xf32>
    %17 = vector.broadcast %2 : f32 to vector<2x128xf32>
    %18 = arith.subf %16, %17 : vector<2x128xf32>
    %19 = arith.mulf %10, %10 : vector<2x128xf32>
    %20 = arith.mulf %14, %14 : vector<2x128xf32>
    %21 = arith.addf %19, %20 : vector<2x128xf32>
    %22 = arith.mulf %18, %18 : vector<2x128xf32>
    %23 = arith.addf %21, %22 : vector<2x128xf32>
    %24 = math.sqrt %23 : vector<2x128xf32>
    %25 = vector.broadcast %3 : f32 to vector<2x128xf32>
    %26 = arith.subf %24, %25 : vector<2x128xf32>
    %27 = math.absf %26 : vector<2x128xf32>
    %cst_9 = arith.constant 0.000000e+00 : f32
    %28 = vector.broadcast %cst_9 : f32 to vector<2x128xf32>
    %29 = arith.subf %28, %27 : vector<2x128xf32>
    %30 = vector.broadcast %6 : f32 to vector<2x128xf32>
    %31 = arith.mulf %29, %30 : vector<2x128xf32>
    %32 = math.exp %31 : vector<2x128xf32>
    %cst_10 = arith.constant 0.000000e+00 : f32
    %33 = vector.broadcast %cst_10 : f32 to vector<2x128xf32>
    %34 = arith.cmpf ogt, %26, %33 : vector<2x128xf32>
    %cst_11 = arith.constant 5.000000e-01 : f32
    %35 = vector.broadcast %cst_11 : f32 to vector<2x128xf32>
    %36 = arith.mulf %35, %32 : vector<2x128xf32>
    %cst_12 = arith.constant 5.000000e-01 : f32
    %37 = vector.broadcast %cst_12 : f32 to vector<2x128xf32>
    %38 = arith.mulf %37, %32 : vector<2x128xf32>
    %cst_13 = arith.constant 1.000000e+00 : f32
    %39 = vector.broadcast %cst_13 : f32 to vector<2x128xf32>
    %40 = arith.subf %39, %38 : vector<2x128xf32>
    %41 = arith.select %34, %36, %40 : vector<2x128xi1>, vector<2x128xf32>
    %42 = vector.broadcast %4 : f32 to vector<2x128xf32>
    %43 = arith.mulf %42, %41 : vector<2x128xf32>
    %cst_14 = arith.constant 1.000000e+00 : f32
    %44 = vector.broadcast %cst_14 : f32 to vector<2x128xf32>
    %45 = arith.subf %44, %43 : vector<2x128xf32>
    %46 = math.log %45 : vector<2x128xf32>
    %cst_15 = arith.constant 0.000000e+00 : f32
    %47 = vector.broadcast %cst_15 : f32 to vector<2x128xf32>
    %48 = arith.subf %47, %46 : vector<2x128xf32>
    %c0_16 = arith.constant 0 : index
    %c0_17 = arith.constant 0 : index
    %49 = vector.load %arg3[%c0_16, %c0_17] : memref<2x128xf32, #tpu.memory_space<vmem>>, vector<2x128xf32>
    %50 = arith.divf %48, %49 : vector<2x128xf32>
    %c0_18 = arith.constant 0 : index
    %c0_19 = arith.constant 0 : index
    %51 = vector.load %arg4[%c0_18, %c0_19] : memref<2x128xf32, #tpu.memory_space<vmem>>, vector<2x128xf32>
    tpu.vector_store %arg4[%c0_18, %c0_19], %50 {strides = array<i32>} : memref<2x128xf32, #tpu.memory_space<vmem>>, vector<2x128xf32>,
    %52 = math.absf %10 : vector<2x128xf32>
    %cst_20 = arith.constant 2.000000e-02 : f32
    %cst_21 = arith.constant 9.800000e-01 : f32
    %53 = vector.broadcast %cst_20 : f32 to vector<2x128xf32>
    %54 = arith.maximumf %53, %52 : vector<2x128xf32>
    %55 = vector.broadcast %cst_21 : f32 to vector<2x128xf32>
    %56 = arith.minimumf %55, %54 : vector<2x128xf32>
    %c6 = arith.constant 6 : index
    %57 = memref.load %arg1[%c6] : memref<9xf32, #tpu.memory_space<smem>>
    %58 = vector.broadcast %57 : f32 to vector<2x128xf32>
    %59 = arith.mulf %56, %58 : vector<2x128xf32>
    %c0_22 = arith.constant 0 : index
    %c0_23 = arith.constant 0 : index
    %c0_24 = arith.constant 0 : index
    %60 = vector.load %arg5[%c0_22, %c0_23, %c0_24] : memref<3x2x128xf32, #tpu.memory_space<vmem>>, vector<1x2x128xf32>
    %61 = vector.shape_cast %60 : vector<1x2x128xf32> to vector<2x128xf32>
    %62 = vector.shape_cast %59 : vector<2x128xf32> to vector<1x2x128xf32>
    tpu.vector_store %arg5[%c0_22, %c0_23, %c0_24], %62 {strides = array<i32>} : memref<3x2x128xf32, #tpu.memory_space<vmem>>, vector<1x2x128xf32>,
    %63 = math.absf %14 : vector<2x128xf32>
    %cst_25 = arith.constant 2.000000e-02 : f32
    %cst_26 = arith.constant 9.800000e-01 : f32
    %64 = vector.broadcast %cst_25 : f32 to vector<2x128xf32>
    %65 = arith.maximumf %64, %63 : vector<2x128xf32>
    %66 = vector.broadcast %cst_26 : f32 to vector<2x128xf32>
    %67 = arith.minimumf %66, %65 : vector<2x128xf32>
    %c7 = arith.constant 7 : index
    %68 = memref.load %arg1[%c7] : memref<9xf32, #tpu.memory_space<smem>>
    %69 = vector.broadcast %68 : f32 to vector<2x128xf32>
    %70 = arith.mulf %67, %69 : vector<2x128xf32>
    %c1_27 = arith.constant 1 : index
    %c0_28 = arith.constant 0 : index
    %c0_29 = arith.constant 0 : index
    %71 = vector.load %arg5[%c1_27, %c0_28, %c0_29] : memref<3x2x128xf32, #tpu.memory_space<vmem>>, vector<1x2x128xf32>
    %72 = vector.shape_cast %71 : vector<1x2x128xf32> to vector<2x128xf32>
    %73 = vector.shape_cast %70 : vector<2x128xf32> to vector<1x2x128xf32>
    tpu.vector_store %arg5[%c1_27, %c0_28, %c0_29], %73 {strides = array<i32>} : memref<3x2x128xf32, #tpu.memory_space<vmem>>, vector<1x2x128xf32>,
    %74 = math.absf %18 : vector<2x128xf32>
    %cst_30 = arith.constant 2.000000e-02 : f32
    %cst_31 = arith.constant 9.800000e-01 : f32
    %75 = vector.broadcast %cst_30 : f32 to vector<2x128xf32>
    %76 = arith.maximumf %75, %74 : vector<2x128xf32>
    %77 = vector.broadcast %cst_31 : f32 to vector<2x128xf32>
    %78 = arith.minimumf %77, %76 : vector<2x128xf32>
    %c8 = arith.constant 8 : index
    %79 = memref.load %arg1[%c8] : memref<9xf32, #tpu.memory_space<smem>>
    %80 = vector.broadcast %79 : f32 to vector<2x128xf32>
    %81 = arith.mulf %78, %80 : vector<2x128xf32>
    %c2_32 = arith.constant 2 : index
    %c0_33 = arith.constant 0 : index
    %c0_34 = arith.constant 0 : index
    %82 = vector.load %arg5[%c2_32, %c0_33, %c0_34] : memref<3x2x128xf32, #tpu.memory_space<vmem>>, vector<1x2x128xf32>
    %83 = vector.shape_cast %82 : vector<1x2x128xf32> to vector<2x128xf32>
    %84 = vector.shape_cast %81 : vector<2x128xf32> to vector<1x2x128xf32>
    tpu.vector_store %arg5[%c2_32, %c0_33, %c0_34], %84 {strides = array<i32>} : memref<3x2x128xf32, #tpu.memory_space<vmem>>, vector<1x2x128xf32>,
    return
  }
  func.func @transform_0(%arg0: i32) -> i32 {
    %c0_i32 = arith.constant 0 : i32
    %c0_i32_0 = arith.constant 0 : i32
    return %c0_i32 : i32
  }
  func.func @transform_1(%arg0: i32) -> (i32, i32, i32) {
    %c0_i32 = arith.constant 0 : i32
    %c0_i32_0 = arith.constant 0 : i32
    %c0_i32_1 = arith.constant 0 : i32
    return %c0_i32, %arg0, %c0_i32_0 : i32, i32, i32
  }
  func.func @transform_2(%arg0: i32) -> (i32, i32) {
    %c0_i32 = arith.constant 0 : i32
    %c0_i32_0 = arith.constant 0 : i32
    return %arg0, %c0_i32 : i32, i32
  }
  func.func @transform_3(%arg0: i32) -> (i32, i32) {
    %c0_i32 = arith.constant 0 : i32
    %c0_i32_0 = arith.constant 0 : i32
    return %arg0, %c0_i32 : i32, i32
  }
  func.func @transform_4(%arg0: i32) -> (i32, i32, i32) {
    %c0_i32 = arith.constant 0 : i32
    %c0_i32_0 = arith.constant 0 : i32
    %c0_i32_1 = arith.constant 0 : i32
    return %c0_i32, %arg0, %c0_i32_0 : i32, i32, i32
  }
}

</mosaic_0001>

<llo_original>
// kernel: sdf_volume_forward.1
$region0: #{sdf_volume_forward.1}
  #allocation0 [shape = 'u32[]', space=smem, size = 0x4, offset = 0x4, fixed_abs, tag = 'smem constant byte address 0x4 - core index']
  #allocation1 [shape = 'u32[144,128]{1,0:T(1,128)}', space=vmem, size = 0x12000, scoped, tag = 'internal scratch']
  %s0 = inlined_call_operand.vmem [shape: f32[9], index: 0, kind: input, shape index: {}]
  %s1 = inlined_call_operand.vmem [shape: f32[3,2,128], index: 1, kind: input, shape index: {}]
  %s2 = inlined_call_operand.vmem [shape: f32[2,128], index: 2, kind: input, shape index: {}]
  %s3 = inlined_call_operand.hbm [shape: f32[2,128], index: 3, kind: output, shape index: {0}]
  %s4 = inlined_call_operand.vmem [shape: f32[3,2,128], index: 4, kind: output, shape index: {1}]
  %5 = xla_tuple %s3, %s4
  %s6 = sld [smem:[#allocation0]]
  $region34: #{sdf_volume_forward.1} parent=0
    _
  %s8 = ssub.s32 1, %s6
  %s9 = scalar_select 0, %s8, %s6
  $region1: #{sdf_volume_forward.1} parent=0
    #allocation2 [shape = 'u8[512]{0}', space=smem, size = 0x200, scoped, tag = 'input window, operand 0, single buffered']
    #allocation3 [shape = 's32[1]{0}', space=sflag, size = 0x4, scoped, tag = 'scoped memory for sdf_volume_forward.1']
    #allocation4 [shape = 's32[1]{0}', space=sflag, size = 0x4, scoped, tag = 'scoped memory for sdf_volume_forward.1']
    #allocation5 [shape = 'u8[1024]{0}', space=vmem, size = 0x400, scoped, tag = 'output window, operand 0, single buffered']
    %10 = vsyncpa [#allocation4], 0
    %11 = vsyncpa [#allocation3], 0
    // Predicated region
    $region2: #{sdf_volume_forward.1} parent=1 // pred_check
      _
    $region3: #{sdf_volume_forward.1} parent=1 // pred_check_branch
      %13 = sbr.rel (0) target = $region5
    $region4: #{sdf_volume_forward.1} parent=1 // pred_region
      %s15 = ssub.s32 16, 16
      %16 = vsyncadd [#allocation4], %s15
      %s18 = sshll.u32 %s0, 4
      %s19 = int_to_ptr.vmem [resolvable:$true] %s18
      %21 = dma.vmem_to_smem %s19, 16, [#allocation2], [#allocation4]
    $region5: #{sdf_volume_forward.1} parent=1 // pred_fallthru
      _
    // Predicated region
    $region6: #{sdf_volume_forward.1} parent=1 // pred_check
      _
    $region7: #{sdf_volume_forward.1} parent=1 // pred_check_branch
      %23 = sbr.rel (0) target = $region9
    $region8: #{sdf_volume_forward.1} parent=1 // pred_region
      _
    $region9: #{sdf_volume_forward.1} parent=1 // pred_fallthru
      _
    // Predicated region
    $region10: #{sdf_volume_forward.1} parent=1 // pred_check
      _
    $region11: #{sdf_volume_forward.1} parent=1 // pred_check_branch
      %25 = sbr.rel (0) target = $region13
    $region12: #{sdf_volume_forward.1} parent=1 // pred_region
      _
    $region13: #{sdf_volume_forward.1} parent=1 // pred_fallthru
      _
    // Predicated region
    $region14: #{sdf_volume_forward.1} parent=1 // pred_check
      _
    $region15: #{sdf_volume_forward.1} parent=1 // pred_check_branch
      %27 = sbr.rel (0) target = $region17
    $region16: #{sdf_volume_forward.1} parent=1 // pred_region
      %28 = dma.done [#allocation4], 16
    $region17: #{sdf_volume_forward.1} parent=1 // pred_fallthru
      _
    %29 = sfence
    %s30 = sld [smem:[#allocation2]]
    %s31 = sld [smem:[#allocation2 + $0x1]]
    %s32 = sld [smem:[#allocation2 + $0x2]]
    %s33 = sld [smem:[#allocation2 + $0x3]]
    %s34 = sld [smem:[#allocation2 + $0x4]]
    %s35 = sld [smem:[#allocation2 + $0x5]]
    %v36 = vstv %s35
    %v37 = vrcp.pop %v36
    %s38 = vtos %v37
    %v39 = vld [vmem:[%s1] sm:$0x3]
    %v40 = vstv %s30
    %v41 = vsub.f32 %v39, %v40
    %s42 = scalar_lea.vmem %s1, 2
    %v43 = vld [vmem:[%s42] sm:$0x3]
    %v44 = vstv %s31
    %v45 = vsub.f32 %v43, %v44
    %s46 = scalar_lea.vmem %s1, 4
    %v47 = vld [vmem:[%s46] sm:$0x3]
    %v48 = vstv %s32
    %v49 = vsub.f32 %v47, %v48
    %v50 = vmul.f32 %v41, %v41
    %v51 = vmul.f32 %v45, %v45
    %v52 = vadd.f32 %v50, %v51
    %v53 = vmul.f32 %v49, %v49
    %v54 = vadd.f32 %v52, %v53
    %v55 = vrsqrt.pop %v54
    %v56 = vmul.f32 %v54, %v55
    %vm57 = vcmp.eq.f32.partialorder %v54, inf
    %v58 = vsel %vm57, %v54, %v56
    %vm59 = vcmp.eq.f32.partialorder %v54, 0.0
    %v60 = vand.u32 %v54, 2147483648
    %v61 = vsel %vm59, %v60, %v58
    %v62 = vstv %s33
    %v63 = vsub.f32 %v61, %v62
    %v64 = vand.u32 2147483647, %v63
    %v65 = vsub.f32 0.0, %v64
    %v66 = vstv %s38
    %v67 = vmul.f32 %v65, %v66
    %v68 = vmul.f32 %v67, 1.442695
    %v69 = vpow.pop %v68
    %vm70 = vcmp.gt.f32.partialorder %v63, 0.0
    %v71 = vmul.f32 %v69, 0.5
    %v72 = vsub.f32 1.0, %v71
    %v73 = vsel %vm70, %v71, %v72
    %v74 = vstv %s34
    %v75 = vmul.f32 %v74, %v73
    %v76 = vsub.f32 1.0, %v75
    %v77 = vlog2.pop %v76
    %v78 = vmul.f32 %v77, 0.6931472
    %v79 = vsub.f32 0.0, %v78
    %v80 = vld [vmem:[%s2] sm:$0x3]
    %v81 = vrcp.pop %v80
    %v82 = vmul.f32 %v79, %v81
    %83 = vst [vmem:[#allocation5] sm:$0x3] %v82
    %v84 = vand.u32 2147483647, %v41
    %v85 = vmax.f32 %v84, 0.02
    %v86 = vmin.f32 %v85, 0.98
    %s87 = sld [smem:[#allocation2 + $0x6]]
    %v88 = vstv %s87
    %v89 = vmul.f32 %v86, %v88
    %90 = vst [vmem:[%s4] sm:$0x3] %v89
    %v91 = vand.u32 2147483647, %v45
    %v92 = vmax.f32 %v91, 0.02
    %v93 = vmin.f32 %v92, 0.98
    %s94 = sld [smem:[#allocation2 + $0x7]]
    %v95 = vstv %s94
    %v96 = vmul.f32 %v93, %v95
    %s97 = scalar_lea.vmem %s4, 2
    %98 = vst [vmem:[%s97] sm:$0x3] %v96
    %v99 = vand.u32 2147483647, %v49
    %v100 = vmax.f32 %v99, 0.02
    %v101 = vmin.f32 %v100, 0.98
    %s102 = sld [smem:[#allocation2 + $0x8]]
    %v103 = vstv %s102
    %v104 = vmul.f32 %v101, %v103
    %s105 = scalar_lea.vmem %s4, 4
    %106 = vst [vmem:[%s105] sm:$0x3] %v104
    // Predicated region
    $region18: #{sdf_volume_forward.1} parent=1 // pred_check
      _
    $region19: #{sdf_volume_forward.1} parent=1 // pred_check_branch
      %108 = sbr.rel (0) target = $region21
    $region20: #{sdf_volume_forward.1} parent=1 // pred_region
      %s110 = ssub.s32 32, 32
      %111 = vsyncadd [#allocation3], %s110
      %s113 = sshll.u32 [#allocation5], 4
      %s114 = int_to_ptr.vmem [resolvable:$true] %s113
      %116 = dma.vmem_to_hbm [thread:$0]  %s114, 32, %s3, [#allocation3]
    $region21: #{sdf_volume_forward.1} parent=1 // pred_fallthru
      _
    // Predicated region
    $region22: #{sdf_volume_forward.1} parent=1 // pred_check
      _
    $region23: #{sdf_volume_forward.1} parent=1 // pred_check_branch
      %118 = sbr.rel (0) target = $region25
    $region24: #{sdf_volume_forward.1} parent=1 // pred_region
      _
    $region25: #{sdf_volume_forward.1} parent=1 // pred_fallthru
      _
    // Predicated region
    $region26: #{sdf_volume_forward.1} parent=1 // pred_check
      _
    $region27: #{sdf_volume_forward.1} parent=1 // pred_check_branch
      %120 = sbr.rel (0) target = $region29
    $region28: #{sdf_volume_forward.1} parent=1 // pred_region
      %121 = dma.done [#allocation3], 32
    $region29: #{sdf_volume_forward.1} parent=1 // pred_fallthru
      _
    // Predicated region
    $region30: #{sdf_volume_forward.1} parent=1 // pred_check
      _
    $region31: #{sdf_volume_forward.1} parent=1 // pred_check_branch
      %123 = sbr.rel (0) target = $region33
    $region32: #{sdf_volume_forward.1} parent=1 // pred_region
      _
    $region33: #{sdf_volume_forward.1} parent=1 // pred_fallthru
      _
    %124 = vsyncpa [#allocation3], 1
    %125 = vsyncpa [#allocation4], 1

</llo_original>
